<compile_context>
chip_gen: v7x
topology: tpu7x:2x2x1
jax: 0.10.0
libtpu: 0.0.40
codegen_flags: <defaults>
</compile_context>

<pallas_src>
import jax
import jax.numpy as jnp
from jax.experimental import pallas as pl
from jax.experimental.pallas import tpu as pltpu


# ------------------------------- Helpers ---------------------------------- #
def _round_up(x, m):
    return (x + m - 1) // m * m


def _lane_granularity():
    """Pad matmul dims to the MXU width: 256 on v6e/v7x, 128 on v5e/older."""
    try:
        kind = jax.devices()[0].device_kind.lower()
    except Exception:
        return 128
    if "v6" in kind or "v7" in kind:
        return 256
    return 128


def _choose_aggregate_first(pdims):
    """(A@H)@W when padded F_in <= padded F_out, else A@(H@W).

    Decided on the padded dims the kernel actually executes (review item)."""
    return tuple(pf_in <= pf_out for pf_in, pf_out in zip(pdims[:-1], pdims[1:]))


# ----------------------------- Pallas kernel ------------------------------ #
def _make_fused_kernel(n_layers, relu_flags, aggregate_first):
    """Kernel running the whole GraphConv stack in one invocation.

    Ref layout: (a_ref, x_ref, w0, b0, w1, b1, ..., o_ref)."""

    def kernel(*refs):
        a_ref, x_ref = refs[0], refs[1]
        o_ref = refs[-1]
        wb_refs = refs[2:-1]

        a = a_ref[...]           # bf16 (n_pad, n_pad)
        h_bf = x_ref[...]        # bf16 (n_pad, pf0) -- already MXU dtype
        for i in range(n_layers):                 # static unrolled Python loop
            w = wb_refs[2 * i][...]               # bf16 (pf_in, pf_out)
            b = wb_refs[2 * i + 1][...]           # f32  (1, pf_out)
            if aggregate_first[i]:
                # (A @ H) @ W
                ah = jnp.dot(a, h_bf, preferred_element_type=jnp.float32)
                out = jnp.dot(ah.astype(jnp.bfloat16), w,
                              preferred_element_type=jnp.float32)
            else:
                # A @ (H @ W)
                hw = jnp.dot(h_bf, w, preferred_element_type=jnp.float32)
                out = jnp.dot(a, hw.astype(jnp.bfloat16),
                              preferred_element_type=jnp.float32)
            out = out + b                 # f32 elementwise (v5e: no bf16 VPU)
            if relu_flags[i]:
                out = jnp.maximum(out, 0.0)
            if i + 1 < n_layers:
                h_bf = out.astype(jnp.bfloat16)   # stays VMEM/vreg-resident
            else:
                o_ref[...] = out.astype(o_ref.dtype)

    return kernel


# ----------------------------- Model wrapper ------------------------------ #
def build_forward(a_hat, params, *, gran=None):
    """Pad/cast A_hat and all layer params ONCE; return a jitted forward(x)."""
    if gran is None:
        gran = _lane_granularity()

    n = a_hat.shape[0]
    n_layers = len(params)
    dims = [params[0][0].shape[0]] + [w.shape[1] for (w, _) in params]

    n_pad = _round_up(n, gran)
    pdims = [_round_up(d, gran) for d in dims]
    relu_flags = tuple(i < n_layers - 1 for i in range(n_layers))
    aggregate_first = _choose_aggregate_first(pdims)

    # --- build-time (one-off) padding + casting --------------------------- #
    a_p = jnp.zeros((n_pad, n_pad), jnp.bfloat16)
    a_p = a_p.at[:n, :n].set(a_hat.astype(jnp.bfloat16))

    wb_args = []
    flops = 0
    bytes_accessed = a_p.size * 2 + n_pad * pdims[0] * 2 + n_pad * pdims[-1] * 4
    for i, (w, b) in enumerate(params):
        f_in, f_out = w.shape
        pf_in, pf_out = pdims[i], pdims[i + 1]
        w_p = jnp.zeros((pf_in, pf_out), jnp.bfloat16)
        w_p = w_p.at[:f_in, :f_out].set(w.astype(jnp.bfloat16))
        b_p = jnp.zeros((1, pf_out), jnp.float32)
        b_p = b_p.at[:, :f_out].set(jnp.asarray(b, jnp.float32).reshape(1, -1))
        wb_args += [w_p, b_p]
        pf_agg = pf_in if aggregate_first[i] else pf_out   # executed branch
        flops += 2 * (n_pad * n_pad * pf_agg + n_pad * pf_in * pf_out)
        bytes_accessed += w_p.size * 2 + b_p.size * 4

    kernel = _make_fused_kernel(n_layers, relu_flags, aggregate_first)
    vmem_spec = pl.BlockSpec(memory_space=pltpu.MemorySpace.VMEM)
    n_inputs = 2 + len(wb_args)

    fused_call = pl.pallas_call(
        kernel,
        out_shape=jax.ShapeDtypeStruct((n_pad, pdims[-1]), jnp.float32),
        in_specs=[vmem_spec] * n_inputs,
        out_specs=vmem_spec,
        cost_estimate=pl.CostEstimate(
            flops=flops, transcendentals=0, bytes_accessed=bytes_accessed),
        compiler_params=pltpu.CompilerParams(
            allow_input_fusion=[True] * n_inputs),
    )

    f_in0, f_out_last = dims[0], dims[-1]
    pf0 = pdims[0]

    @jax.jit
    def forward(x):
        # Only the per-example x is padded per call; the pad/cast producer can
        # fuse into the pallas_call input (allow_input_fusion).
        x_p = jnp.zeros((n_pad, pf0), jnp.bfloat16)
        x_p = x_p.at[:n, :f_in0].set(x.astype(jnp.bfloat16))
        out_p = fused_call(a_p, x_p, *wb_args)
        return out_p[:n, :f_out_last]

    return forward, aggregate_first


# ------------------------------- Init utils -------------------------------- #
def init_params(key, layer_dims):
    """Deterministic Xavier-uniform weights + zero bias per GraphConv layer."""
    params = []
    for i, (f_in, f_out) in enumerate(zip(layer_dims[:-1], layer_dims[1:])):
        k = jax.random.fold_in(key, i)
        limit = jnp.sqrt(6.0 / (f_in + f_out))
        w = jax.random.uniform(k, (f_in, f_out), jnp.float32, -limit, limit)
        b = jnp.zeros((1, f_out), jnp.float32)
        params.append((w, b))
    return params


def build_normalized_adjacency(key, n_nodes, edge_prob=0.1):
    """Random directed graph + self loops; DGL 'both' normalization."""
    a = (jax.random.uniform(key, (n_nodes, n_nodes)) < edge_prob).astype(
        jnp.float32)
    a = jnp.maximum(a, jnp.eye(n_nodes, dtype=jnp.float32))  # self loops
    out_deg = jnp.sum(a, axis=1)
    in_deg = jnp.sum(a, axis=0)
    d_out_inv_sqrt = 1.0 / jnp.sqrt(out_deg)
    d_in_inv_sqrt = 1.0 / jnp.sqrt(in_deg)
    a_hat = d_in_inv_sqrt[:, None] * a.T * d_out_inv_sqrt[None, :]
    return a_hat


# ----------------------------- Reference checks ---------------------------- #
def reference_forward_f32(a_hat, x, params):
    h = x
    n_layers = len(params)
    for i, (w, b) in enumerate(params):
        h = a_hat @ (h @ w) + b
        if i < n_layers - 1:
            h = jnp.maximum(h, 0.0)
    return h


def reference_forward_bf16(a_hat, x, params, aggregate_first):
    """Pure-JAX reference matching the kernel's bf16-operand / f32-acc math."""
    a = a_hat.astype(jnp.bfloat16)
    h_bf = x.astype(jnp.bfloat16)
    n_layers = len(params)
    out = None
    for i, (w, b) in enumerate(params):
        w_bf = w.astype(jnp.bfloat16)
        if aggregate_first[i]:
            ah = jnp.dot(a, h_bf, preferred_element_type=jnp.float32)
            out = jnp.dot(ah.astype(jnp.bfloat16), w_bf,
                          preferred_element_type=jnp.float32)
        else:
            hw = jnp.dot(h_bf, w_bf, preferred_element_type=jnp.float32)
            out = jnp.dot(a, hw.astype(jnp.bfloat16),
                          preferred_element_type=jnp.float32)
        out = out + b
        if i < n_layers - 1:
            out = jnp.maximum(out, 0.0)
            h_bf = out.astype(jnp.bfloat16)
    return out


# --------------------------------- Main ------------------------------------ #
if __name__ == "__main__":
    key = jax.random.PRNGKey(0)
    k_graph, k_feat, k_param = jax.random.split(key, 3)

    # Small synthetic graph / feature sizes (PPI-style stacking, tiny dims).
    N_NODES = 64
    INPUT_SIZE = 32
    HIDDEN_SIZE = 64
    OUTPUT_SIZE = 16
    N_LAYERS = 2   # -> GraphConv stack: (in->hid, relu), (hid->hid, relu), (hid->out)

    a_hat = build_normalized_adjacency(k_graph, N_NODES)
    x = jax.random.normal(k_feat, (N_NODES, INPUT_SIZE), jnp.float32)

    layer_dims = [INPUT_SIZE] + [HIDDEN_SIZE] * N_LAYERS + [OUTPUT_SIZE]
    params = init_params(k_param, layer_dims)

    # Build once (all padding / casting of A_hat, W, b hoisted here), call many.
    forward, aggregate_first = build_forward(a_hat, params)

    out = jax.block_until_ready(forward(x))
    assert out.shape == (N_NODES, OUTPUT_SIZE)

    # Exact-math reference (same bf16 operand / f32 accumulate sequence).
    ref_bf16 = reference_forward_bf16(a_hat, x, params, aggregate_first)
    err_bf16 = float(jnp.max(jnp.abs(out - ref_bf16)))
    assert jnp.allclose(out, ref_bf16, atol=1e-3, rtol=1e-3), (
        f"mismatch vs bf16-matched reference: {err_bf16}")

    # Semantics check vs full-f32 reference (bf16 MXU operands => loose tol).
    ref_f32 = reference_forward_f32(a_hat, x, params)
    err_f32 = float(jnp.max(jnp.abs(out - ref_f32)))
    assert jnp.allclose(out, ref_f32, atol=5e-2, rtol=5e-2), (
        f"mismatch vs f32 reference: {err_f32}")

    print("KERNEL_OK")
</pallas_src>

<mosaic_0001>
module attributes {stable_mosaic.version = 11 : i64} {
  func.func @kernel(%arg0: memref<128x128xbf16, #tpu.memory_space<vmem>>, %arg1: memref<128x128xbf16, #tpu.memory_space<vmem>>, %arg2: memref<128x128xbf16, #tpu.memory_space<vmem>>, %arg3: memref<1x128xf32, #tpu.memory_space<vmem>>, %arg4: memref<128x128xbf16, #tpu.memory_space<vmem>>, %arg5: memref<1x128xf32, #tpu.memory_space<vmem>>, %arg6: memref<128x128xbf16, #tpu.memory_space<vmem>>, %arg7: memref<1x128xf32, #tpu.memory_space<vmem>>, %arg8: memref<128x128xf32, #tpu.memory_space<vmem>>) attributes {dimension_semantics = [], scalar_prefetch = 0 : i64, scratch_operands = 0 : i64, tpu.core_type = #tpu.core_type<tc>} {
    %c0 = arith.constant 0 : index
    %c0_0 = arith.constant 0 : index
    %0 = vector.load %arg0[%c0, %c0_0] : memref<128x128xbf16, #tpu.memory_space<vmem>>, vector<128x128xbf16>
    %c0_1 = arith.constant 0 : index
    %c0_2 = arith.constant 0 : index
    %1 = vector.load %arg1[%c0_1, %c0_2] : memref<128x128xbf16, #tpu.memory_space<vmem>>, vector<128x128xbf16>
    %c0_3 = arith.constant 0 : index
    %c0_4 = arith.constant 0 : index
    %2 = vector.load %arg2[%c0_3, %c0_4] : memref<128x128xbf16, #tpu.memory_space<vmem>>, vector<128x128xbf16>
    %c0_5 = arith.constant 0 : index
    %c0_6 = arith.constant 0 : index
    %3 = vector.load %arg3[%c0_5, %c0_6] : memref<1x128xf32, #tpu.memory_space<vmem>>, vector<1x128xf32>
    %cst = arith.constant dense<0.000000e+00> : vector<128x128xf32>
    %4 = tpu.matmul %0, %1, %cst {dimension_numbers = #tpu.dot_dimension_numbers<[1], [0], [0], [1], [0, 0, 1, 1], [], []>} : vector<128x128xbf16>, vector<128x128xbf16>, vector<128x128xf32> -> vector<128x128xf32>
    %5 = arith.truncf %4 : vector<128x128xf32> to vector<128x128xbf16>
    %cst_7 = arith.constant dense<0.000000e+00> : vector<128x128xf32>
    %6 = tpu.matmul %5, %2, %cst_7 {dimension_numbers = #tpu.dot_dimension_numbers<[1], [0], [0], [1], [0, 0, 1, 1], [], []>} : vector<128x128xbf16>, vector<128x128xbf16>, vector<128x128xf32> -> vector<128x128xf32>
    %7 = vector.broadcast %3 : vector<1x128xf32> to vector<128x128xf32>
    %8 = arith.addf %6, %7 : vector<128x128xf32>
    %cst_8 = arith.constant 0.000000e+00 : f32
    %9 = vector.broadcast %cst_8 : f32 to vector<128x128xf32>
    %10 = arith.maximumf %8, %9 : vector<128x128xf32>
    %11 = arith.truncf %10 : vector<128x128xf32> to vector<128x128xbf16>
    %c0_9 = arith.constant 0 : index
    %c0_10 = arith.constant 0 : index
    %12 = vector.load %arg4[%c0_9, %c0_10] : memref<128x128xbf16, #tpu.memory_space<vmem>>, vector<128x128xbf16>
    %c0_11 = arith.constant 0 : index
    %c0_12 = arith.constant 0 : index
    %13 = vector.load %arg5[%c0_11, %c0_12] : memref<1x128xf32, #tpu.memory_space<vmem>>, vector<1x128xf32>
    %cst_13 = arith.constant dense<0.000000e+00> : vector<128x128xf32>
    %14 = tpu.matmul %0, %11, %cst_13 {dimension_numbers = #tpu.dot_dimension_numbers<[1], [0], [0], [1], [0, 0, 1, 1], [], []>} : vector<128x128xbf16>, vector<128x128xbf16>, vector<128x128xf32> -> vector<128x128xf32>
    %15 = arith.truncf %14 : vector<128x128xf32> to vector<128x128xbf16>
    %cst_14 = arith.constant dense<0.000000e+00> : vector<128x128xf32>
    %16 = tpu.matmul %15, %12, %cst_14 {dimension_numbers = #tpu.dot_dimension_numbers<[1], [0], [0], [1], [0, 0, 1, 1], [], []>} : vector<128x128xbf16>, vector<128x128xbf16>, vector<128x128xf32> -> vector<128x128xf32>
    %17 = vector.broadcast %13 : vector<1x128xf32> to vector<128x128xf32>
    %18 = arith.addf %16, %17 : vector<128x128xf32>
    %cst_15 = arith.constant 0.000000e+00 : f32
    %19 = vector.broadcast %cst_15 : f32 to vector<128x128xf32>
    %20 = arith.maximumf %18, %19 : vector<128x128xf32>
    %21 = arith.truncf %20 : vector<128x128xf32> to vector<128x128xbf16>
    %c0_16 = arith.constant 0 : index
    %c0_17 = arith.constant 0 : index
    %22 = vector.load %arg6[%c0_16, %c0_17] : memref<128x128xbf16, #tpu.memory_space<vmem>>, vector<128x128xbf16>
    %c0_18 = arith.constant 0 : index
    %c0_19 = arith.constant 0 : index
    %23 = vector.load %arg7[%c0_18, %c0_19] : memref<1x128xf32, #tpu.memory_space<vmem>>, vector<1x128xf32>
    %cst_20 = arith.constant dense<0.000000e+00> : vector<128x128xf32>
    %24 = tpu.matmul %0, %21, %cst_20 {dimension_numbers = #tpu.dot_dimension_numbers<[1], [0], [0], [1], [0, 0, 1, 1], [], []>} : vector<128x128xbf16>, vector<128x128xbf16>, vector<128x128xf32> -> vector<128x128xf32>
    %25 = arith.truncf %24 : vector<128x128xf32> to vector<128x128xbf16>
    %cst_21 = arith.constant dense<0.000000e+00> : vector<128x128xf32>
    %26 = tpu.matmul %25, %22, %cst_21 {dimension_numbers = #tpu.dot_dimension_numbers<[1], [0], [0], [1], [0, 0, 1, 1], [], []>} : vector<128x128xbf16>, vector<128x128xbf16>, vector<128x128xf32> -> vector<128x128xf32>
    %27 = vector.broadcast %23 : vector<1x128xf32> to vector<128x128xf32>
    %28 = arith.addf %26, %27 : vector<128x128xf32>
    %c0_22 = arith.constant 0 : index
    %c0_23 = arith.constant 0 : index
    %29 = vector.load %arg8[%c0_22, %c0_23] : memref<128x128xf32, #tpu.memory_space<vmem>>, vector<128x128xf32>
    tpu.vector_store %arg8[%c0_22, %c0_23], %28 {strides = array<i32>} : memref<128x128xf32, #tpu.memory_space<vmem>>, vector<128x128xf32>,
    return
  }
}

</mosaic_0001>

<llo_original>
// kernel: forward.2
$region0: #{forward.2}
  #allocation0 [shape = 'u32[]', space=smem, size = 0x4, offset = 0x4, fixed_abs, tag = 'smem constant byte address 0x4 - core index']
  #allocation1 [shape = 'u32[144,128]{1,0:T(1,128)}', space=vmem, size = 0x12000, scoped, tag = 'internal scratch']
  #allocation2 [shape = 'u32[2048]{0}', space=vmem, size = 0x2000, scoped, tag = 'scoped memory for forward.2']
  #allocation3 [shape = 'u32[2048]{0}', space=vmem, size = 0x2000, scoped, tag = 'scoped memory for forward.2']
  #allocation4 [shape = 'u32[2048]{0}', space=vmem, size = 0x2000, scoped, tag = 'scoped memory for forward.2']
  #allocation5 [shape = 'u32[2048]{0}', space=vmem, size = 0x2000, scoped, tag = 'scoped memory for forward.2']
  #allocation6 [shape = 'u32[2048]{0}', space=vmem, size = 0x2000, scoped, tag = 'scoped memory for forward.2']
  %s0 = inlined_call_operand.hbm [shape: bf16[128,128], index: 0, kind: input, shape index: {}]
  %s1 = inlined_call_operand.hbm [shape: bf16[128,128], index: 1, kind: input, shape index: {}]
  %s2 = inlined_call_operand.hbm [shape: bf16[128,128], index: 2, kind: input, shape index: {}]
  %s3 = inlined_call_operand.vmem [shape: bf16[128,128], index: 3, kind: input, shape index: {}]
  %s4 = inlined_call_operand.vmem [shape: bf16[64,32], index: 4, kind: input, shape index: {}]
  %s5 = inlined_call_operand.<no memory space> [shape: bf16[], index: 5, kind: input, shape index: {}]
  %s6 = inlined_call_operand.<no memory space> [shape: f32[], index: 6, kind: input, shape index: {}]
  %s7 = inlined_call_operand.vmem [shape: f32[128,128], index: 7, kind: output, shape index: {}]
  %s8 = sld [smem:[#allocation0]]
  $region42: #{forward.2} parent=0
    _
  %s10 = ssub.s32 1, %s8
  %s11 = scalar_select 0, %s10, %s8
  %v12 = vstv %s5
  %v13 = vunpack.i.l.bf16 %v12
  %v15 = vunpack.i.h.bf16 %v12
  %v17 = vstv %s6
  %v18 = vstv %s6
  %v19 = vstv %s6
  $region1: #{forward.2} parent=0
    #allocation7 [shape = 'u8[32768]{0}', space=vmem, size = 0x8000, scoped, tag = 'input window, operand 0, single buffered']
    #allocation8 [shape = 's32[1]{0}', space=sflag, size = 0x4, scoped, tag = 'scoped memory for forward.2']
    #allocation9 [shape = 'u8[32768]{0}', space=vmem, size = 0x8000, scoped, tag = 'input window, operand 2, single buffered']
    #allocation10 [shape = 's32[1]{0}', space=sflag, size = 0x4, scoped, tag = 'scoped memory for forward.2']
    #allocation11 [shape = 'u8[32768]{0}', space=vmem, size = 0x8000, scoped, tag = 'input window, operand 4, single buffered']
    #allocation12 [shape = 'u8[32768]{0}', space=vmem, size = 0x8000, dematerialized = true, scoped, tag = 'FusionAdapter Buffer %fusion.1 = bf16[128,128]{1,0:T(8,128)(2,1)} fusion(%param_4.2, %param_5.2), kind=kLoop, calls=%fused_computation.1.clone, metadata={op_name="jit(forward)/scatter" stack_frame_id=9}']
    #allocation13 [shape = 'u8[512]{0}', space=vmem, size = 0x400, dematerialized = true, scoped, tag = 'FusionAdapter Buffer %fusion.2 = f32[1,128]{1,0:T(1,128)} fusion(%param_6.1), kind=kLoop, calls=%fused_computation.2.clone']
    #allocation14 [shape = 'u8[512]{0}', space=vmem, size = 0x400, dematerialized = true, scoped, tag = 'FusionAdapter Buffer %fusion.2 = f32[1,128]{1,0:T(1,128)} fusion(%param_6.1), kind=kLoop, calls=%fused_computation.2.clone']
    #allocation15 [shape = 'u8[512]{0}', space=vmem, size = 0x400, dematerialized = true, scoped, tag = 'FusionAdapter Buffer %fusion.2 = f32[1,128]{1,0:T(1,128)} fusion(%param_6.1), kind=kLoop, calls=%fused_computation.2.clone']
    %20 = vsyncpa [#allocation8], 0
    %21 = vsyncpa [#allocation10], 0
    // Predicated region
    $region2: #{forward.2} parent=1 // pred_check
      _
    $region3: #{forward.2} parent=1 // pred_check_branch
      %23 = sbr.rel (0) target = $region5
    $region4: #{forward.2} parent=1 // pred_region
      %s25 = ssub.s32 1024, 1024
      %26 = vsyncadd [#allocation8], %s25
      %s27 = sshll.u32 [#allocation7], 4
      %s28 = int_to_ptr.vmem [resolvable:$true] %s27
      %33 = dma.hbm_to_vmem [thread:$0]  %s0, 1024, %s28, [#allocation8], 128, 128, 8
    $region5: #{forward.2} parent=1 // pred_fallthru
      _
    // Predicated region
    $region6: #{forward.2} parent=1 // pred_check
      _
    $region7: #{forward.2} parent=1 // pred_check_branch
      %35 = sbr.rel (0) target = $region9
    $region8: #{forward.2} parent=1 // pred_region
      _
    $region9: #{forward.2} parent=1 // pred_fallthru
      _
    // Predicated region
    $region10: #{forward.2} parent=1 // pred_check
      _
    $region11: #{forward.2} parent=1 // pred_check_branch
      %37 = sbr.rel (0) target = $region13
    $region12: #{forward.2} parent=1 // pred_region
      %s39 = ssub.s32 1024, 1024
      %40 = vsyncadd [#allocation10], %s39
      %s41 = sshll.u32 [#allocation9], 4
      %s42 = int_to_ptr.vmem [resolvable:$true] %s41
      %47 = dma.hbm_to_vmem [thread:$0]  %s1, 1024, %s42, [#allocation10], 128, 128, 8
    $region13: #{forward.2} parent=1 // pred_fallthru
      _
    // Predicated region
    $region14: #{forward.2} parent=1 // pred_check
      _
    $region15: #{forward.2} parent=1 // pred_check_branch
      %49 = sbr.rel (0) target = $region17
    $region16: #{forward.2} parent=1 // pred_region
      %s51 = ssub.s32 1024, 1024
      %52 = vsyncadd [#allocation10], %s51
      %s53 = sshll.u32 [#allocation11], 4
      %s54 = int_to_ptr.vmem [resolvable:$true] %s53
      %59 = dma.hbm_to_vmem [thread:$0]  %s2, 1024, %s54, [#allocation10], 128, 128, 8
    $region17: #{forward.2} parent=1 // pred_fallthru
      _
    // Predicated region
    $region18: #{forward.2} parent=1 // pred_check
      _
    $region19: #{forward.2} parent=1 // pred_check_branch
      %61 = sbr.rel (0) target = $region21
    $region20: #{forward.2} parent=1 // pred_region
      _
    $region21: #{forward.2} parent=1 // pred_fallthru
      _
    // Predicated region
    $region22: #{forward.2} parent=1 // pred_check
      _
    $region23: #{forward.2} parent=1 // pred_check_branch
      %63 = sbr.rel (0) target = $region25
    $region24: #{forward.2} parent=1 // pred_region
      %64 = dma.done [#allocation8], 1024
    $region25: #{forward.2} parent=1 // pred_fallthru
      _
    // Predicated region
    $region26: #{forward.2} parent=1 // pred_check
      _
    $region27: #{forward.2} parent=1 // pred_check_branch
      %66 = sbr.rel (0) target = $region29
    $region28: #{forward.2} parent=1 // pred_region
      %67 = dma.done [#allocation10], 1024
    $region29: #{forward.2} parent=1 // pred_fallthru
      _
    // Predicated region
    $region30: #{forward.2} parent=1 // pred_check
      _
    $region31: #{forward.2} parent=1 // pred_check_branch
      %69 = sbr.rel (0) target = $region33
    $region32: #{forward.2} parent=1 // pred_region
      %70 = dma.done [#allocation10], 1024
    $region33: #{forward.2} parent=1 // pred_fallthru
      _
    %s72 = sor.u32 255, 127
    %s73 = sand.u32 %s72, 85
    %s74 = sshrl.u32 %s73, 1
    %s75 = sor.u32 %s73, %s74
    %s76 = sand.u32 51, %s75
    %s77 = sshrl.u32 %s76, 2
    %s78 = sor.u32 %s76, %s77
    %s79 = sand.u32 15, %s78
    %v80 = vld [vmem:[%s4] sm:%s79]
    %v81 = vunpack.c.l.bf16 %v80
    %v82 = vunpack.c.h.bf16 %v80
    %v83 = vlaneseq
    %v84 = vand.u32 %v83, 127
    %vm86 = vcmp.lt.s32.totalorder %v84, 32
    %v87 = vsel %vm86, %v81, %v13
    %v88 = vpack.c.bf16 0.0, %v87
    %90 = vst [vmem:[#allocation12] sm:$0xf] %v88
    %s91 = scalar_lea.vmem %s4, 4
    %s93 = sor.u32 255, 127
    %s94 = sand.u32 %s93, 85
    %s95 = sshrl.u32 %s94, 1
    %s96 = sor.u32 %s94, %s95
    %s97 = sand.u32 51, %s96
    %s98 = sshrl.u32 %s97, 2
    %s99 = sor.u32 %s97, %s98
    %s100 = sand.u32 15, %s99
    %v101 = vld [vmem:[%s91] sm:%s100]
    %v102 = vunpack.c.l.bf16 %v101
    %v103 = vunpack.c.h.bf16 %v101
    %v104 = vlaneseq
    %v105 = vand.u32 %v104, 127
    %vm107 = vcmp.lt.s32.totalorder %v105, 32
    %v108 = vsel %vm107, %v102, %v13
    %s109 = scalar_lea.vmem [#allocation12], 4
    %v110 = vpack.c.bf16 0.0, %v108
    %112 = vst [vmem:[%s109] sm:$0xf] %v110
    %s113 = scalar_lea.vmem %s4, 8
    %s115 = sor.u32 255, 127
    %s116 = sand.u32 %s115, 85
    %s117 = sshrl.u32 %s116, 1
    %s118 = sor.u32 %s116, %s117
    %s119 = sand.u32 51, %s118
    %s120 = sshrl.u32 %s119, 2
    %s121 = sor.u32 %s119, %s120
    %s122 = sand.u32 15, %s121
    %v123 = vld [vmem:[%s113] sm:%s122]
    %v124 = vunpack.c.l.bf16 %v123
    %v125 = vunpack.c.h.bf16 %v123
    %v126 = vlaneseq
    %v127 = vand.u32 %v126, 127
    %vm129 = vcmp.lt.s32.totalorder %v127, 32
    %v130 = vsel %vm129, %v124, %v13
    %s131 = scalar_lea.vmem [#allocation12], 8
    %v132 = vpack.c.bf16 0.0, %v130
    %134 = vst [vmem:[%s131] sm:$0xf] %v132
    %s135 = scalar_lea.vmem %s4, 12
    %s137 = sor.u32 255, 127
    %s138 = sand.u32 %s137, 85
    %s139 = sshrl.u32 %s138, 1
    %s140 = sor.u32 %s138, %s139
    %s141 = sand.u32 51, %s140
    %s142 = sshrl.u32 %s141, 2
    %s143 = sor.u32 %s141, %s142
    %s144 = sand.u32 15, %s143
    %v145 = vld [vmem:[%s135] sm:%s144]
    %v146 = vunpack.c.l.bf16 %v145
    %v147 = vunpack.c.h.bf16 %v145
    %v148 = vlaneseq
    %v149 = vand.u32 %v148, 127
    %vm151 = vcmp.lt.s32.totalorder %v149, 32
    %v152 = vsel %vm151, %v146, %v13
    %s153 = scalar_lea.vmem [#allocation12], 12
    %v154 = vpack.c.bf16 0.0, %v152
    %156 = vst [vmem:[%s153] sm:$0xf] %v154
    %s157 = scalar_lea.vmem %s4, 16
    %s159 = sor.u32 255, 127
    %s160 = sand.u32 %s159, 85
    %s161 = sshrl.u32 %s160, 1
    %s162 = sor.u32 %s160, %s161
    %s163 = sand.u32 51, %s162
    %s164 = sshrl.u32 %s163, 2
    %s165 = sor.u32 %s163, %s164
    %s166 = sand.u32 15, %s165
    %v167 = vld [vmem:[%s157] sm:%s166]
    %v168 = vunpack.c.l.bf16 %v167
    %v169 = vunpack.c.h.bf16 %v167
    %v170 = vlaneseq
    %v171 = vand.u32 %v170, 127
    %vm173 = vcmp.lt.s32.totalorder %v171, 32
    %v174 = vsel %vm173, %v168, %v13
    %s175 = scalar_lea.vmem [#allocation12], 16
    %v176 = vpack.c.bf16 0.0, %v174
    %178 = vst [vmem:[%s175] sm:$0xf] %v176
    %s179 = scalar_lea.vmem %s4, 20
    %s181 = sor.u32 255, 127
    %s182 = sand.u32 %s181, 85
    %s183 = sshrl.u32 %s182, 1
    %s184 = sor.u32 %s182, %s183
    %s185 = sand.u32 51, %s184
    %s186 = sshrl.u32 %s185, 2
    %s187 = sor.u32 %s185, %s186
    %s188 = sand.u32 15, %s187
    %v189 = vld [vmem:[%s179] sm:%s188]
    %v190 = vunpack.c.l.bf16 %v189
    %v191 = vunpack.c.h.bf16 %v189
    %v192 = vlaneseq
    %v193 = vand.u32 %v192, 127
    %vm195 = vcmp.lt.s32.totalorder %v193, 32
    %v196 = vsel %vm195, %v190, %v13
    %s197 = scalar_lea.vmem [#allocation12], 20
    %v198 = vpack.c.bf16 0.0, %v196
    %200 = vst [vmem:[%s197] sm:$0xf] %v198
    %s201 = scalar_lea.vmem %s4, 24
    %s203 = sor.u32 255, 127
    %s204 = sand.u32 %s203, 85
    %s205 = sshrl.u32 %s204, 1
    %s206 = sor.u32 %s204, %s205
    %s207 = sand.u32 51, %s206
    %s208 = sshrl.u32 %s207, 2
    %s209 = sor.u32 %s207, %s208
    %s210 = sand.u32 15, %s209
    %v211 = vld [vmem:[%s201] sm:%s210]
    %v212 = vunpack.c.l.bf16 %v211
    %v213 = vunpack.c.h.bf16 %v211
    %v214 = vlaneseq
    %v215 = vand.u32 %v214, 127
    %vm217 = vcmp.lt.s32.totalorder %v215, 32
    %v218 = vsel %vm217, %v212, %v13
    %s219 = scalar_lea.vmem [#allocation12], 24
    %v220 = vpack.c.bf16 0.0, %v218
    %222 = vst [vmem:[%s219] sm:$0xf] %v220
    %s223 = scalar_lea.vmem %s4, 28
    %s225 = sor.u32 255, 127
    %s226 = sand.u32 %s225, 85
    %s227 = sshrl.u32 %s226, 1
    %s228 = sor.u32 %s226, %s227
    %s229 = sand.u32 51, %s228
    %s230 = sshrl.u32 %s229, 2
    %s231 = sor.u32 %s229, %s230
    %s232 = sand.u32 15, %s231
    %v233 = vld [vmem:[%s223] sm:%s232]
    %v234 = vunpack.c.l.bf16 %v233
    %v235 = vunpack.c.h.bf16 %v233
    %v236 = vlaneseq
    %v237 = vand.u32 %v236, 127
    %vm239 = vcmp.lt.s32.totalorder %v237, 32
    %v240 = vsel %vm239, %v234, %v13
    %s241 = scalar_lea.vmem [#allocation12], 28
    %v242 = vpack.c.bf16 0.0, %v240
    %244 = vst [vmem:[%s241] sm:$0xf] %v242
    %s245 = scalar_lea.vmem [#allocation12], 32
    %v246 = vpack.c.bf16 0.0, %v13
    %248 = vst [vmem:[%s245] sm:$0xf] %v246
    %s249 = scalar_lea.vmem [#allocation12], 36
    %v250 = vpack.c.bf16 0.0, %v13
    %252 = vst [vmem:[%s249] sm:$0xf] %v250
    %s253 = scalar_lea.vmem [#allocation12], 40
    %v254 = vpack.c.bf16 0.0, %v13
    %256 = vst [vmem:[%s253] sm:$0xf] %v254
    %s257 = scalar_lea.vmem [#allocation12], 44
    %v258 = vpack.c.bf16 0.0, %v13
    %260 = vst [vmem:[%s257] sm:$0xf] %v258
    %s261 = scalar_lea.vmem [#allocation12], 48
    %v262 = vpack.c.bf16 0.0, %v13
    %264 = vst [vmem:[%s261] sm:$0xf] %v262
    %s265 = scalar_lea.vmem [#allocation12], 52
    %v266 = vpack.c.bf16 0.0, %v13
    %268 = vst [vmem:[%s265] sm:$0xf] %v266
    %s269 = scalar_lea.vmem [#allocation12], 56
    %v270 = vpack.c.bf16 0.0, %v13
    %272 = vst [vmem:[%s269] sm:$0xf] %v270
    %s273 = scalar_lea.vmem [#allocation12], 60
    %v274 = vpack.c.bf16 0.0, %v13
    %276 = vst [vmem:[%s273] sm:$0xf] %v274
    %278 = vst [vmem:[#allocation13] sm:$0x1] %v17
    %280 = vst [vmem:[#allocation14] sm:$0x1] %v18
    %282 = vst [vmem:[#allocation15] sm:$0x1] %v19
    %v284 = vld [vmem:[#allocation7] sm:$0xff]
    %v285 = vld [vmem:[#allocation7 + $0x8] sm:$0xff]
    %v286 = vld [vmem:[#allocation7 + $0x10] sm:$0xff]
    %v287 = vld [vmem:[#allocation7 + $0x18] sm:$0xff]
    %v288 = vld [vmem:[#allocation7 + $0x20] sm:$0xff]
    %v289 = vld [vmem:[#allocation7 + $0x28] sm:$0xff]
    %v290 = vld [vmem:[#allocation7 + $0x30] sm:$0xff]
    %v291 = vld [vmem:[#allocation7 + $0x38] sm:$0xff]
    %v292 = vld [vmem:[#allocation12] sm:$0xf]
    %v293 = vld [vmem:[#allocation12 + $0x4] sm:$0xf]
    %v294 = vld [vmem:[#allocation12 + $0x8] sm:$0xf]
    %v295 = vld [vmem:[#allocation12 + $0xc] sm:$0xf]
    %v296 = vld [vmem:[#allocation12 + $0x10] sm:$0xf]
    %v297 = vld [vmem:[#allocation12 + $0x14] sm:$0xf]
    %v298 = vld [vmem:[#allocation12 + $0x18] sm:$0xf]
    %v299 = vld [vmem:[#allocation12 + $0x1c] sm:$0xf]
    %v300 = vld [vmem:[#allocation12 + $0x20] sm:$0xf]
    %v301 = vld [vmem:[#allocation12 + $0x24] sm:$0xf]
    %v302 = vld [vmem:[#allocation12 + $0x28] sm:$0xf]
    %v303 = vld [vmem:[#allocation12 + $0x2c] sm:$0xf]
    %v304 = vld [vmem:[#allocation12 + $0x30] sm:$0xf]
    %v305 = vld [vmem:[#allocation12 + $0x34] sm:$0xf]
    %v306 = vld [vmem:[#allocation12 + $0x38] sm:$0xf]
    %v307 = vld [vmem:[#allocation12 + $0x3c] sm:$0xf]
    %v308 = vld [vmem:[#allocation9] sm:$0xff]
    %v309 = vld [vmem:[#allocation9 + $0x8] sm:$0xff]
    %v310 = vld [vmem:[#allocation9 + $0x10] sm:$0xff]
    %v311 = vld [vmem:[#allocation9 + $0x18] sm:$0xff]
    %v312 = vld [vmem:[#allocation9 + $0x20] sm:$0xff]
    %v313 = vld [vmem:[#allocation9 + $0x28] sm:$0xff]
    %v314 = vld [vmem:[#allocation9 + $0x30] sm:$0xff]
    %v315 = vld [vmem:[#allocation9 + $0x38] sm:$0xff]
    %v316 = vld [vmem:[#allocation13] sm:$0x1]
    %v333 = vunpack.c.l.b16 %v292
    %v334 = vunpack.c.l.b16 %v293
    %v335 = vunpack.c.l.b16 %v294
    %v336 = vunpack.c.l.b16 %v295
    %v337 = vunpack.c.l.b16 %v296
    %v338 = vunpack.c.l.b16 %v297
    %v339 = vunpack.c.l.b16 %v298
    %v340 = vunpack.c.l.b16 %v299
    %v341 = vunpack.c.l.b16 %v300
    %v342 = vunpack.c.l.b16 %v301
    %v343 = vunpack.c.l.b16 %v302
    %v344 = vunpack.c.l.b16 %v303
    %v345 = vunpack.c.l.b16 %v304
    %v346 = vunpack.c.l.b16 %v305
    %v347 = vunpack.c.l.b16 %v306
    %v348 = vunpack.c.l.b16 %v307
    %v349 = vpack.c.b16 %v334, %v333
    %v350 = vpack.c.b16 %v336, %v335
    %v351 = vpack.c.b16 %v338, %v337
    %v352 = vpack.c.b16 %v340, %v339
    %v353 = vpack.c.b16 %v342, %v341
    %v354 = vpack.c.b16 %v344, %v343
    %v355 = vpack.c.b16 %v346, %v345
    %v356 = vpack.c.b16 %v348, %v347
    %365 = vmatprep.subr.bf16.mxu0 0
    %366 = vmatpush1.bf16.msra.mxu0 %v349
    %367 = vmatprep.subr.bf16.mxu0 0
    %368 = vmatpush1.bf16.msra.mxu0 %v350
    %369 = vmatprep.subr.bf16.mxu0 0
    %370 = vmatpush1.bf16.msra.mxu0 %v351
    %371 = vmatprep.subr.bf16.mxu0 0
    %372 = vmatpush1.bf16.msra.mxu0 %v352
    %373 = vmatprep.subr.bf16.mxu0 0
    %374 = vmatpush1.bf16.msra.mxu0 %v353
    %375 = vmatprep.subr.bf16.mxu0 0
    %376 = vmatpush1.bf16.msra.mxu0 %v354
    %377 = vmatprep.subr.bf16.mxu0 0
    %378 = vmatpush1.bf16.msra.mxu0 %v355
    %379 = vmatprep.subr.bf16.mxu0 0
    %380 = vmatpush1.bf16.msra.mxu0 %v356
    %381 = vmatprep.subr.bf16.mxu0 0
    %382 = vmatpush1.bf16.msra.mxu0 0
    %383 = vmatprep.subr.bf16.mxu0 0
    %384 = vmatpush1.bf16.msra.mxu0 0
    %385 = vmatprep.subr.bf16.mxu0 0
    %386 = vmatpush1.bf16.msra.mxu0 0
    %387 = vmatprep.subr.bf16.mxu0 0
    %388 = vmatpush1.bf16.msra.mxu0 0
    %389 = vmatprep.subr.bf16.mxu0 0
    %390 = vmatpush1.bf16.msra.mxu0 0
    %391 = vmatprep.subr.bf16.mxu0 0
    %392 = vmatpush1.bf16.msra.mxu0 0
    %393 = vmatprep.subr.bf16.mxu0 0
    %394 = vmatpush1.bf16.msra.mxu0 0
    %395 = vmatprep.subr.bf16.mxu0 0
    %396 = vmatpush1.bf16.msra.mxu0 0
    %397 = vmatprep.mubr.bf16.mxu0 0
    %398 = vmatmul.mubr.bf16.gmra.mrb[0].mxu0 %v284
    %v399 = vpop.f32.mrb[0].mxu0
    %v400 = vadd.f32 0.0, %v399
    %v401 = vpop.f32.mrb[0].mxu0
    %v402 = vpop.f32.mrb[0].mxu0
    %v403 = vadd.f32 0.0, %v402
    %v404 = vpop.f32.mrb[0].mxu0
    %405 = vmatprep.mubr.bf16.mxu0 0
    %406 = vmatmul.mubr.bf16.gmra.mrb[0].mxu0 %v285
    %v407 = vpop.f32.mrb[0].mxu0
    %v408 = vadd.f32 0.0, %v407
    %v409 = vpop.f32.mrb[0].mxu0
    %v410 = vpop.f32.mrb[0].mxu0
    %v411 = vadd.f32 0.0, %v410
    %v412 = vpop.f32.mrb[0].mxu0
    %413 = vmatprep.mubr.bf16.mxu0 0
    %414 = vmatmul.mubr.bf16.gmra.mrb[0].mxu0 %v286
    %v415 = vpop.f32.mrb[0].mxu0
    %v416 = vadd.f32 0.0, %v415
    %v417 = vpop.f32.mrb[0].mxu0
    %v418 = vpop.f32.mrb[0].mxu0
    %v419 = vadd.f32 0.0, %v418
    %v420 = vpop.f32.mrb[0].mxu0
    %421 = vmatprep.mubr.bf16.mxu0 0
    %422 = vmatmul.mubr.bf16.gmra.mrb[0].mxu0 %v287
    %v423 = vpop.f32.mrb[0].mxu0
    %v424 = vadd.f32 0.0, %v423
    %v425 = vpop.f32.mrb[0].mxu0
    %v426 = vpop.f32.mrb[0].mxu0
    %v427 = vadd.f32 0.0, %v426
    %v428 = vpop.f32.mrb[0].mxu0
    %429 = vmatprep.mubr.bf16.mxu0 0
    %430 = vmatmul.mubr.bf16.gmra.mrb[0].mxu0 %v288
    %v431 = vpop.f32.mrb[0].mxu0
    %v432 = vadd.f32 0.0, %v431
    %v433 = vpop.f32.mrb[0].mxu0
    %v434 = vpop.f32.mrb[0].mxu0
    %v435 = vadd.f32 0.0, %v434
    %v436 = vpop.f32.mrb[0].mxu0
    %437 = vmatprep.mubr.bf16.mxu0 0
    %438 = vmatmul.mubr.bf16.gmra.mrb[0].mxu0 %v289
    %v439 = vpop.f32.mrb[0].mxu0
    %v440 = vadd.f32 0.0, %v439
    %v441 = vpop.f32.mrb[0].mxu0
    %v442 = vpop.f32.mrb[0].mxu0
    %v443 = vadd.f32 0.0, %v442
    %v444 = vpop.f32.mrb[0].mxu0
    %445 = vmatprep.mubr.bf16.mxu0 0
    %446 = vmatmul.mubr.bf16.gmra.mrb[0].mxu0 %v290
    %v447 = vpop.f32.mrb[0].mxu0
    %v448 = vadd.f32 0.0, %v447
    %v449 = vpop.f32.mrb[0].mxu0
    %v450 = vpop.f32.mrb[0].mxu0
    %v451 = vadd.f32 0.0, %v450
    %v452 = vpop.f32.mrb[0].mxu0
    %453 = vmatprep.mubr.bf16.mxu0 0
    %454 = vmatmul.mubr.bf16.gmra.mrb[0].mxu0 %v291
    %v455 = vpop.f32.mrb[0].mxu0
    %v456 = vadd.f32 0.0, %v455
    %v457 = vpop.f32.mrb[0].mxu0
    %v458 = vpop.f32.mrb[0].mxu0
    %v459 = vadd.f32 0.0, %v458
    %v460 = vpop.f32.mrb[0].mxu0
    %461 = vdwg.mxu0
    %v462 = vpack.c.bf16 %v403, %v400
    %v463 = vpack.c.bf16 %v411, %v408
    %v464 = vpack.c.bf16 %v419, %v416
    %v465 = vpack.c.bf16 %v427, %v424
    %v466 = vpack.c.bf16 %v435, %v432
    %v467 = vpack.c.bf16 %v443, %v440
    %v468 = vpack.c.bf16 %v451, %v448
    %v469 = vpack.c.bf16 %v459, %v456
    %v471 = vlaneseq
    %v472 = vshrl.u32 %v471, 7
    %v473 = vsub.s32 0, %v472
    %v474 = vrot.slane %v316, %v473
    %476 = vmatprep.subr.bf16.mxu0 0
    %477 = vmatpush1.bf16.msra.mxu0 %v308
    %478 = vmatprep.subr.bf16.mxu0 0
    %479 = vmatpush1.bf16.msra.mxu0 %v309
    %480 = vmatprep.subr.bf16.mxu0 0
    %481 = vmatpush1.bf16.msra.mxu0 %v310
    %482 = vmatprep.subr.bf16.mxu0 0
    %483 = vmatpush1.bf16.msra.mxu0 %v311
    %484 = vmatprep.subr.bf16.mxu0 0
    %485 = vmatpush1.bf16.msra.mxu0 %v312
    %486 = vmatprep.subr.bf16.mxu0 0
    %487 = vmatpush1.bf16.msra.mxu0 %v313
    %488 = vmatprep.subr.bf16.mxu0 0
    %489 = vmatpush1.bf16.msra.mxu0 %v314
    %490 = vmatprep.subr.bf16.mxu0 0
    %491 = vmatpush1.bf16.msra.mxu0 %v315
    %492 = vmatprep.subr.bf16.mxu0 0
    %493 = vmatpush1.bf16.msra.mxu0 0
    %494 = vmatprep.subr.bf16.mxu0 0
    %495 = vmatpush1.bf16.msra.mxu0 0
    %496 = vmatprep.subr.bf16.mxu0 0
    %497 = vmatpush1.bf16.msra.mxu0 0
    %498 = vmatprep.subr.bf16.mxu0 0
    %499 = vmatpush1.bf16.msra.mxu0 0
    %500 = vmatprep.subr.bf16.mxu0 0
    %501 = vmatpush1.bf16.msra.mxu0 0
    %502 = vmatprep.subr.bf16.mxu0 0
    %503 = vmatpush1.bf16.msra.mxu0 0
    %504 = vmatprep.subr.bf16.mxu0 0
    %505 = vmatpush1.bf16.msra.mxu0 0
    %506 = vmatprep.subr.bf16.mxu0 0
    %507 = vmatpush1.bf16.msra.mxu0 0
    %508 = vmatprep.mubr.bf16.mxu0 0
    %509 = vmatmul.mubr.bf16.gmra.mrb[0].mxu0 %v462
    %v510 = vpop.f32.mrb[0].mxu0
    %v511 = vadd.f32 %v474, %v510
    %v512 = vpop.f32.mrb[0].mxu0
    %v513 = vpop.f32.mrb[0].mxu0
    %v514 = vadd.f32 %v474, %v513
    %v515 = vpop.f32.mrb[0].mxu0
    %516 = vmatprep.mubr.bf16.mxu0 0
    %517 = vmatmul.mubr.bf16.gmra.mrb[0].mxu0 %v463
    %v518 = vpop.f32.mrb[0].mxu0
    %v519 = vadd.f32 %v474, %v518
    %v520 = vpop.f32.mrb[0].mxu0
    %v521 = vpop.f32.mrb[0].mxu0
    %v522 = vadd.f32 %v474, %v521
    %v523 = vpop.f32.mrb[0].mxu0
    %524 = vmatprep.mubr.bf16.mxu0 0
    %525 = vmatmul.mubr.bf16.gmra.mrb[0].mxu0 %v464
    %v526 = vpop.f32.mrb[0].mxu0
    %v527 = vadd.f32 %v474, %v526
    %v528 = vpop.f32.mrb[0].mxu0
    %v529 = vpop.f32.mrb[0].mxu0
    %v530 = vadd.f32 %v474, %v529
    %v531 = vpop.f32.mrb[0].mxu0
    %532 = vmatprep.mubr.bf16.mxu0 0
    %533 = vmatmul.mubr.bf16.gmra.mrb[0].mxu0 %v465
    %v534 = vpop.f32.mrb[0].mxu0
    %v535 = vadd.f32 %v474, %v534
    %v536 = vpop.f32.mrb[0].mxu0
    %v537 = vpop.f32.mrb[0].mxu0
    %v538 = vadd.f32 %v474, %v537
    %v539 = vpop.f32.mrb[0].mxu0
    %540 = vmatprep.mubr.bf16.mxu0 0
    %541 = vmatmul.mubr.bf16.gmra.mrb[0].mxu0 %v466
    %v542 = vpop.f32.mrb[0].mxu0
    %v543 = vadd.f32 %v474, %v542
    %v544 = vpop.f32.mrb[0].mxu0
    %v545 = vpop.f32.mrb[0].mxu0
    %v546 = vadd.f32 %v474, %v545
    %v547 = vpop.f32.mrb[0].mxu0
    %548 = vmatprep.mubr.bf16.mxu0 0
    %549 = vmatmul.mubr.bf16.gmra.mrb[0].mxu0 %v467
    %v550 = vpop.f32.mrb[0].mxu0
    %v551 = vadd.f32 %v474, %v550
    %v552 = vpop.f32.mrb[0].mxu0
    %v553 = vpop.f32.mrb[0].mxu0
    %v554 = vadd.f32 %v474, %v553
    %v555 = vpop.f32.mrb[0].mxu0
    %556 = vmatprep.mubr.bf16.mxu0 0
    %557 = vmatmul.mubr.bf16.gmra.mrb[0].mxu0 %v468
    %v558 = vpop.f32.mrb[0].mxu0
    %v559 = vadd.f32 %v474, %v558
    %v560 = vpop.f32.mrb[0].mxu0
    %v561 = vpop.f32.mrb[0].mxu0
    %v562 = vadd.f32 %v474, %v561
    %v563 = vpop.f32.mrb[0].mxu0
    %564 = vmatprep.mubr.bf16.mxu0 0
    %565 = vmatmul.mubr.bf16.gmra.mrb[0].mxu0 %v469
    %v566 = vpop.f32.mrb[0].mxu0
    %v567 = vadd.f32 %v474, %v566
    %v568 = vpop.f32.mrb[0].mxu0
    %v569 = vpop.f32.mrb[0].mxu0
    %v570 = vadd.f32 %v474, %v569
    %v571 = vpop.f32.mrb[0].mxu0
    %572 = vdwg.mxu0
    %v573 = vmax.f32 %v511, 0.0
    %v574 = vmax.f32 %v514, 0.0
    %v575 = vmax.f32 %v519, 0.0
    %v576 = vmax.f32 %v522, 0.0
    %v577 = vmax.f32 %v527, 0.0
    %v578 = vmax.f32 %v530, 0.0
    %v579 = vmax.f32 %v535, 0.0
    %v580 = vmax.f32 %v538, 0.0
    %v581 = vmax.f32 %v543, 0.0
    %v582 = vmax.f32 %v546, 0.0
    %v583 = vmax.f32 %v551, 0.0
    %v584 = vmax.f32 %v554, 0.0
    %v585 = vmax.f32 %v559, 0.0
    %v586 = vmax.f32 %v562, 0.0
    %v587 = vmax.f32 %v567, 0.0
    %v588 = vmax.f32 %v570, 0.0
    %v589 = vpack.c.bf16 %v574, %v573
    %v590 = vpack.c.bf16 %v576, %v575
    %v591 = vpack.c.bf16 %v578, %v577
    %v592 = vpack.c.bf16 %v580, %v579
    %v593 = vpack.c.bf16 %v582, %v581
    %v594 = vpack.c.bf16 %v584, %v583
    %v595 = vpack.c.bf16 %v586, %v585
    %v596 = vpack.c.bf16 %v588, %v587
    %v597 = vld [vmem:[#allocation11] sm:$0xff]
    %v598 = vld [vmem:[#allocation11 + $0x8] sm:$0xff]
    %v599 = vld [vmem:[#allocation11 + $0x10] sm:$0xff]
    %v600 = vld [vmem:[#allocation11 + $0x18] sm:$0xff]
    %v601 = vld [vmem:[#allocation11 + $0x20] sm:$0xff]
    %v602 = vld [vmem:[#allocation11 + $0x28] sm:$0xff]
    %v603 = vld [vmem:[#allocation11 + $0x30] sm:$0xff]
    %v604 = vld [vmem:[#allocation11 + $0x38] sm:$0xff]
    %v605 = vld [vmem:[#allocation14] sm:$0x1]
    %606 = vmatprep.subr.bf16.mxu0 0
    %607 = vmatpush1.bf16.msra.mxu0 %v589
    %608 = vmatprep.subr.bf16.mxu0 0
    %609 = vmatpush1.bf16.msra.mxu0 %v590
    %610 = vmatprep.subr.bf16.mxu0 0
    %611 = vmatpush1.bf16.msra.mxu0 %v591
    %612 = vmatprep.subr.bf16.mxu0 0
    %613 = vmatpush1.bf16.msra.mxu0 %v592
    %614 = vmatprep.subr.bf16.mxu0 0
    %615 = vmatpush1.bf16.msra.mxu0 %v593
    %616 = vmatprep.subr.bf16.mxu0 0
    %617 = vmatpush1.bf16.msra.mxu0 %v594
    %618 = vmatprep.subr.bf16.mxu0 0
    %619 = vmatpush1.bf16.msra.mxu0 %v595
    %620 = vmatprep.subr.bf16.mxu0 0
    %621 = vmatpush1.bf16.msra.mxu0 %v596
    %622 = vmatprep.subr.bf16.mxu0 0
    %623 = vmatpush1.bf16.msra.mxu0 0
    %624 = vmatprep.subr.bf16.mxu0 0
    %625 = vmatpush1.bf16.msra.mxu0 0
    %626 = vmatprep.subr.bf16.mxu0 0
    %627 = vmatpush1.bf16.msra.mxu0 0
    %628 = vmatprep.subr.bf16.mxu0 0
    %629 = vmatpush1.bf16.msra.mxu0 0
    %630 = vmatprep.subr.bf16.mxu0 0
    %631 = vmatpush1.bf16.msra.mxu0 0
    %632 = vmatprep.subr.bf16.mxu0 0
    %633 = vmatpush1.bf16.msra.mxu0 0
    %634 = vmatprep.subr.bf16.mxu0 0
    %635 = vmatpush1.bf16.msra.mxu0 0
    %636 = vmatprep.subr.bf16.mxu0 0
    %637 = vmatpush1.bf16.msra.mxu0 0
    %638 = vmatprep.mubr.bf16.mxu0 0
    %639 = vmatmul.mubr.bf16.gmra.mrb[0].mxu0 %v284
    %v640 = vpop.f32.mrb[0].mxu0
    %v641 = vadd.f32 0.0, %v640
    %v642 = vpop.f32.mrb[0].mxu0
    %v643 = vpop.f32.mrb[0].mxu0
    %v644 = vadd.f32 0.0, %v643
    %v645 = vpop.f32.mrb[0].mxu0
    %646 = vmatprep.mubr.bf16.mxu0 0
    %647 = vmatmul.mubr.bf16.gmra.mrb[0].mxu0 %v285
    %v648 = vpop.f32.mrb[0].mxu0
    %v649 = vadd.f32 0.0, %v648
    %v650 = vpop.f32.mrb[0].mxu0
    %v651 = vpop.f32.mrb[0].mxu0
    %v652 = vadd.f32 0.0, %v651
    %v653 = vpop.f32.mrb[0].mxu0
    %654 = vmatprep.mubr.bf16.mxu0 0
    %655 = vmatmul.mubr.bf16.gmra.mrb[0].mxu0 %v286
    %v656 = vpop.f32.mrb[0].mxu0
    %v657 = vadd.f32 0.0, %v656
    %v658 = vpop.f32.mrb[0].mxu0
    %v659 = vpop.f32.mrb[0].mxu0
    %v660 = vadd.f32 0.0, %v659
    %v661 = vpop.f32.mrb[0].mxu0
    %662 = vmatprep.mubr.bf16.mxu0 0
    %663 = vmatmul.mubr.bf16.gmra.mrb[0].mxu0 %v287
    %v664 = vpop.f32.mrb[0].mxu0
    %v665 = vadd.f32 0.0, %v664
    %v666 = vpop.f32.mrb[0].mxu0
    %v667 = vpop.f32.mrb[0].mxu0
    %v668 = vadd.f32 0.0, %v667
    %v669 = vpop.f32.mrb[0].mxu0
    %670 = vmatprep.mubr.bf16.mxu0 0
    %671 = vmatmul.mubr.bf16.gmra.mrb[0].mxu0 %v288
    %v672 = vpop.f32.mrb[0].mxu0
    %v673 = vadd.f32 0.0, %v672
    %v674 = vpop.f32.mrb[0].mxu0
    %v675 = vpop.f32.mrb[0].mxu0
    %v676 = vadd.f32 0.0, %v675
    %v677 = vpop.f32.mrb[0].mxu0
    %678 = vmatprep.mubr.bf16.mxu0 0
    %679 = vmatmul.mubr.bf16.gmra.mrb[0].mxu0 %v289
    %v680 = vpop.f32.mrb[0].mxu0
    %v681 = vadd.f32 0.0, %v680
    %v682 = vpop.f32.mrb[0].mxu0
    %v683 = vpop.f32.mrb[0].mxu0
    %v684 = vadd.f32 0.0, %v683
    %v685 = vpop.f32.mrb[0].mxu0
    %686 = vmatprep.mubr.bf16.mxu0 0
    %687 = vmatmul.mubr.bf16.gmra.mrb[0].mxu0 %v290
    %v688 = vpop.f32.mrb[0].mxu0
    %v689 = vadd.f32 0.0, %v688
    %v690 = vpop.f32.mrb[0].mxu0
    %v691 = vpop.f32.mrb[0].mxu0
    %v692 = vadd.f32 0.0, %v691
    %v693 = vpop.f32.mrb[0].mxu0
    %694 = vmatprep.mubr.bf16.mxu0 0
    %695 = vmatmul.mubr.bf16.gmra.mrb[0].mxu0 %v291
    %v696 = vpop.f32.mrb[0].mxu0
    %v697 = vadd.f32 0.0, %v696
    %v698 = vpop.f32.mrb[0].mxu0
    %v699 = vpop.f32.mrb[0].mxu0
    %v700 = vadd.f32 0.0, %v699
    %v701 = vpop.f32.mrb[0].mxu0
    %702 = vdwg.mxu0
    %v703 = vpack.c.bf16 %v644, %v641
    %v704 = vpack.c.bf16 %v652, %v649
    %v705 = vpack.c.bf16 %v660, %v657
    %v706 = vpack.c.bf16 %v668, %v665
    %v707 = vpack.c.bf16 %v676, %v673
    %v708 = vpack.c.bf16 %v684, %v681
    %v709 = vpack.c.bf16 %v692, %v689
    %v710 = vpack.c.bf16 %v700, %v697
    %v712 = vlaneseq
    %v713 = vshrl.u32 %v712, 7
    %v714 = vsub.s32 0, %v713
    %v715 = vrot.slane %v605, %v714
    %717 = vmatprep.subr.bf16.mxu0 0
    %718 = vmatpush1.bf16.msra.mxu0 %v597
    %719 = vmatprep.subr.bf16.mxu0 0
    %720 = vmatpush1.bf16.msra.mxu0 %v598
    %721 = vmatprep.subr.bf16.mxu0 0
    %722 = vmatpush1.bf16.msra.mxu0 %v599
    %723 = vmatprep.subr.bf16.mxu0 0
    %724 = vmatpush1.bf16.msra.mxu0 %v600
    %725 = vmatprep.subr.bf16.mxu0 0
    %726 = vmatpush1.bf16.msra.mxu0 %v601
    %727 = vmatprep.subr.bf16.mxu0 0
    %728 = vmatpush1.bf16.msra.mxu0 %v602
    %729 = vmatprep.subr.bf16.mxu0 0
    %730 = vmatpush1.bf16.msra.mxu0 %v603
    %731 = vmatprep.subr.bf16.mxu0 0
    %732 = vmatpush1.bf16.msra.mxu0 %v604
    %733 = vmatprep.subr.bf16.mxu0 0
    %734 = vmatpush1.bf16.msra.mxu0 0
    %735 = vmatprep.subr.bf16.mxu0 0
    %736 = vmatpush1.bf16.msra.mxu0 0
    %737 = vmatprep.subr.bf16.mxu0 0
    %738 = vmatpush1.bf16.msra.mxu0 0
    %739 = vmatprep.subr.bf16.mxu0 0
    %740 = vmatpush1.bf16.msra.mxu0 0
    %741 = vmatprep.subr.bf16.mxu0 0
    %742 = vmatpush1.bf16.msra.mxu0 0
    %743 = vmatprep.subr.bf16.mxu0 0
    %744 = vmatpush1.bf16.msra.mxu0 0
    %745 = vmatprep.subr.bf16.mxu0 0
    %746 = vmatpush1.bf16.msra.mxu0 0
    %747 = vmatprep.subr.bf16.mxu0 0
    %748 = vmatpush1.bf16.msra.mxu0 0
    %749 = vmatprep.mubr.bf16.mxu0 0
    %750 = vmatmul.mubr.bf16.gmra.mrb[0].mxu0 %v703
    %v751 = vpop.f32.mrb[0].mxu0
    %v752 = vadd.f32 %v715, %v751
    %v753 = vpop.f32.mrb[0].mxu0
    %v754 = vpop.f32.mrb[0].mxu0
    %v755 = vadd.f32 %v715, %v754
    %v756 = vpop.f32.mrb[0].mxu0
    %757 = vmatprep.mubr.bf16.mxu0 0
    %758 = vmatmul.mubr.bf16.gmra.mrb[0].mxu0 %v704
    %v759 = vpop.f32.mrb[0].mxu0
    %v760 = vadd.f32 %v715, %v759
    %v761 = vpop.f32.mrb[0].mxu0
    %v762 = vpop.f32.mrb[0].mxu0
    %v763 = vadd.f32 %v715, %v762
    %v764 = vpop.f32.mrb[0].mxu0
    %765 = vmatprep.mubr.bf16.mxu0 0
    %766 = vmatmul.mubr.bf16.gmra.mrb[0].mxu0 %v705
    %v767 = vpop.f32.mrb[0].mxu0
    %v768 = vadd.f32 %v715, %v767
    %v769 = vpop.f32.mrb[0].mxu0
    %v770 = vpop.f32.mrb[0].mxu0
    %v771 = vadd.f32 %v715, %v770
    %v772 = vpop.f32.mrb[0].mxu0
    %773 = vmatprep.mubr.bf16.mxu0 0
    %774 = vmatmul.mubr.bf16.gmra.mrb[0].mxu0 %v706
    %v775 = vpop.f32.mrb[0].mxu0
    %v776 = vadd.f32 %v715, %v775
    %v777 = vpop.f32.mrb[0].mxu0
    %v778 = vpop.f32.mrb[0].mxu0
    %v779 = vadd.f32 %v715, %v778
    %v780 = vpop.f32.mrb[0].mxu0
    %781 = vmatprep.mubr.bf16.mxu0 0
    %782 = vmatmul.mubr.bf16.gmra.mrb[0].mxu0 %v707
    %v783 = vpop.f32.mrb[0].mxu0
    %v784 = vadd.f32 %v715, %v783
    %v785 = vpop.f32.mrb[0].mxu0
    %v786 = vpop.f32.mrb[0].mxu0
    %v787 = vadd.f32 %v715, %v786
    %v788 = vpop.f32.mrb[0].mxu0
    %789 = vmatprep.mubr.bf16.mxu0 0
    %790 = vmatmul.mubr.bf16.gmra.mrb[0].mxu0 %v708
    %v791 = vpop.f32.mrb[0].mxu0
    %v792 = vadd.f32 %v715, %v791
    %v793 = vpop.f32.mrb[0].mxu0
    %v794 = vpop.f32.mrb[0].mxu0
    %v795 = vadd.f32 %v715, %v794
    %v796 = vpop.f32.mrb[0].mxu0
    %797 = vmatprep.mubr.bf16.mxu0 0
    %798 = vmatmul.mubr.bf16.gmra.mrb[0].mxu0 %v709
    %v799 = vpop.f32.mrb[0].mxu0
    %v800 = vadd.f32 %v715, %v799
    %v801 = vpop.f32.mrb[0].mxu0
    %v802 = vpop.f32.mrb[0].mxu0
    %v803 = vadd.f32 %v715, %v802
    %v804 = vpop.f32.mrb[0].mxu0
    %805 = vmatprep.mubr.bf16.mxu0 0
    %806 = vmatmul.mubr.bf16.gmra.mrb[0].mxu0 %v710
    %v807 = vpop.f32.mrb[0].mxu0
    %v808 = vadd.f32 %v715, %v807
    %v809 = vpop.f32.mrb[0].mxu0
    %v810 = vpop.f32.mrb[0].mxu0
    %v811 = vadd.f32 %v715, %v810
    %v812 = vpop.f32.mrb[0].mxu0
    %813 = vdwg.mxu0
    %v814 = vmax.f32 %v752, 0.0
    %v815 = vmax.f32 %v755, 0.0
    %v816 = vmax.f32 %v760, 0.0
    %v817 = vmax.f32 %v763, 0.0
    %v818 = vmax.f32 %v768, 0.0
    %v819 = vmax.f32 %v771, 0.0
    %v820 = vmax.f32 %v776, 0.0
    %v821 = vmax.f32 %v779, 0.0
    %v822 = vmax.f32 %v784, 0.0
    %v823 = vmax.f32 %v787, 0.0
    %v824 = vmax.f32 %v792, 0.0
    %v825 = vmax.f32 %v795, 0.0
    %v826 = vmax.f32 %v800, 0.0
    %v827 = vmax.f32 %v803, 0.0
    %v828 = vmax.f32 %v808, 0.0
    %v829 = vmax.f32 %v811, 0.0
    %v830 = vpack.c.bf16 %v815, %v814
    %v831 = vpack.c.bf16 %v817, %v816
    %v832 = vpack.c.bf16 %v819, %v818
    %v833 = vpack.c.bf16 %v821, %v820
    %v834 = vpack.c.bf16 %v823, %v822
    %v835 = vpack.c.bf16 %v825, %v824
    %v836 = vpack.c.bf16 %v827, %v826
    %v837 = vpack.c.bf16 %v829, %v828
    %v838 = vld [vmem:[%s3] sm:$0xff]
    %v839 = vld [vmem:[%s3 + $0x8] sm:$0xff]
    %v840 = vld [vmem:[%s3 + $0x10] sm:$0xff]
    %v841 = vld [vmem:[%s3 + $0x18] sm:$0xff]
    %v842 = vld [vmem:[%s3 + $0x20] sm:$0xff]
    %v843 = vld [vmem:[%s3 + $0x28] sm:$0xff]
    %v844 = vld [vmem:[%s3 + $0x30] sm:$0xff]
    %v845 = vld [vmem:[%s3 + $0x38] sm:$0xff]
    %v846 = vld [vmem:[#allocation15] sm:$0x1]
    %847 = vmatprep.subr.bf16.mxu0 0
    %848 = vmatpush1.bf16.msra.mxu0 %v830
    %849 = vmatprep.subr.bf16.mxu0 0
    %850 = vmatpush1.bf16.msra.mxu0 %v831
    %851 = vmatprep.subr.bf16.mxu0 0
    %852 = vmatpush1.bf16.msra.mxu0 %v832
    %853 = vmatprep.subr.bf16.mxu0 0
    %854 = vmatpush1.bf16.msra.mxu0 %v833
    %855 = vmatprep.subr.bf16.mxu0 0
    %856 = vmatpush1.bf16.msra.mxu0 %v834
    %857 = vmatprep.subr.bf16.mxu0 0
    %858 = vmatpush1.bf16.msra.mxu0 %v835
    %859 = vmatprep.subr.bf16.mxu0 0
    %860 = vmatpush1.bf16.msra.mxu0 %v836
    %861 = vmatprep.subr.bf16.mxu0 0
    %862 = vmatpush1.bf16.msra.mxu0 %v837
    %863 = vmatprep.subr.bf16.mxu0 0
    %864 = vmatpush1.bf16.msra.mxu0 0
    %865 = vmatprep.subr.bf16.mxu0 0
    %866 = vmatpush1.bf16.msra.mxu0 0
    %867 = vmatprep.subr.bf16.mxu0 0
    %868 = vmatpush1.bf16.msra.mxu0 0
    %869 = vmatprep.subr.bf16.mxu0 0
    %870 = vmatpush1.bf16.msra.mxu0 0
    %871 = vmatprep.subr.bf16.mxu0 0
    %872 = vmatpush1.bf16.msra.mxu0 0
    %873 = vmatprep.subr.bf16.mxu0 0
    %874 = vmatpush1.bf16.msra.mxu0 0
    %875 = vmatprep.subr.bf16.mxu0 0
    %876 = vmatpush1.bf16.msra.mxu0 0
    %877 = vmatprep.subr.bf16.mxu0 0
    %878 = vmatpush1.bf16.msra.mxu0 0
    %879 = vmatprep.mubr.bf16.mxu0 0
    %880 = vmatmul.mubr.bf16.gmra.mrb[0].mxu0 %v284
    %v881 = vpop.f32.mrb[0].mxu0
    %v882 = vadd.f32 0.0, %v881
    %v883 = vpop.f32.mrb[0].mxu0
    %v884 = vpop.f32.mrb[0].mxu0
    %v885 = vadd.f32 0.0, %v884
    %v886 = vpop.f32.mrb[0].mxu0
    %887 = vmatprep.mubr.bf16.mxu0 0
    %888 = vmatmul.mubr.bf16.gmra.mrb[0].mxu0 %v285
    %v889 = vpop.f32.mrb[0].mxu0
    %v890 = vadd.f32 0.0, %v889
    %v891 = vpop.f32.mrb[0].mxu0
    %v892 = vpop.f32.mrb[0].mxu0
    %v893 = vadd.f32 0.0, %v892
    %v894 = vpop.f32.mrb[0].mxu0
    %895 = vmatprep.mubr.bf16.mxu0 0
    %896 = vmatmul.mubr.bf16.gmra.mrb[0].mxu0 %v286
    %v897 = vpop.f32.mrb[0].mxu0
    %v898 = vadd.f32 0.0, %v897
    %v899 = vpop.f32.mrb[0].mxu0
    %v900 = vpop.f32.mrb[0].mxu0
    %v901 = vadd.f32 0.0, %v900
    %v902 = vpop.f32.mrb[0].mxu0
    %903 = vmatprep.mubr.bf16.mxu0 0
    %904 = vmatmul.mubr.bf16.gmra.mrb[0].mxu0 %v287
    %v905 = vpop.f32.mrb[0].mxu0
    %v906 = vadd.f32 0.0, %v905
    %v907 = vpop.f32.mrb[0].mxu0
    %v908 = vpop.f32.mrb[0].mxu0
    %v909 = vadd.f32 0.0, %v908
    %v910 = vpop.f32.mrb[0].mxu0
    %911 = vmatprep.mubr.bf16.mxu0 0
    %912 = vmatmul.mubr.bf16.gmra.mrb[0].mxu0 %v288
    %v913 = vpop.f32.mrb[0].mxu0
    %v914 = vadd.f32 0.0, %v913
    %v915 = vpop.f32.mrb[0].mxu0
    %v916 = vpop.f32.mrb[0].mxu0
    %v917 = vadd.f32 0.0, %v916
    %v918 = vpop.f32.mrb[0].mxu0
    %919 = vmatprep.mubr.bf16.mxu0 0
    %920 = vmatmul.mubr.bf16.gmra.mrb[0].mxu0 %v289
    %v921 = vpop.f32.mrb[0].mxu0
    %v922 = vadd.f32 0.0, %v921
    %v923 = vpop.f32.mrb[0].mxu0
    %v924 = vpop.f32.mrb[0].mxu0
    %v925 = vadd.f32 0.0, %v924
    %v926 = vpop.f32.mrb[0].mxu0
    %927 = vmatprep.mubr.bf16.mxu0 0
    %928 = vmatmul.mubr.bf16.gmra.mrb[0].mxu0 %v290
    %v929 = vpop.f32.mrb[0].mxu0
    %v930 = vadd.f32 0.0, %v929
    %v931 = vpop.f32.mrb[0].mxu0
    %v932 = vpop.f32.mrb[0].mxu0
    %v933 = vadd.f32 0.0, %v932
    %v934 = vpop.f32.mrb[0].mxu0
    %935 = vmatprep.mubr.bf16.mxu0 0
    %936 = vmatmul.mubr.bf16.gmra.mrb[0].mxu0 %v291
    %v937 = vpop.f32.mrb[0].mxu0
    %v938 = vadd.f32 0.0, %v937
    %v939 = vpop.f32.mrb[0].mxu0
    %v940 = vpop.f32.mrb[0].mxu0
    %v941 = vadd.f32 0.0, %v940
    %v942 = vpop.f32.mrb[0].mxu0
    %943 = vdwg.mxu0
    %v944 = vpack.c.bf16 %v885, %v882
    %v945 = vpack.c.bf16 %v893, %v890
    %v946 = vpack.c.bf16 %v901, %v898
    %v947 = vpack.c.bf16 %v909, %v906
    %v948 = vpack.c.bf16 %v917, %v914
    %v949 = vpack.c.bf16 %v925, %v922
    %v950 = vpack.c.bf16 %v933, %v930
    %v951 = vpack.c.bf16 %v941, %v938
    %v953 = vlaneseq
    %v954 = vshrl.u32 %v953, 7
    %v955 = vsub.s32 0, %v954
    %v956 = vrot.slane %v846, %v955
    %958 = vmatprep.subr.bf16.mxu0 0
    %959 = vmatpush1.bf16.msra.mxu0 %v838
    %960 = vmatprep.subr.bf16.mxu0 0
    %961 = vmatpush1.bf16.msra.mxu0 %v839
    %962 = vmatprep.subr.bf16.mxu0 0
    %963 = vmatpush1.bf16.msra.mxu0 %v840
    %964 = vmatprep.subr.bf16.mxu0 0
    %965 = vmatpush1.bf16.msra.mxu0 %v841
    %966 = vmatprep.subr.bf16.mxu0 0
    %967 = vmatpush1.bf16.msra.mxu0 %v842
    %968 = vmatprep.subr.bf16.mxu0 0
    %969 = vmatpush1.bf16.msra.mxu0 %v843
    %970 = vmatprep.subr.bf16.mxu0 0
    %971 = vmatpush1.bf16.msra.mxu0 %v844
    %972 = vmatprep.subr.bf16.mxu0 0
    %973 = vmatpush1.bf16.msra.mxu0 %v845
    %974 = vmatprep.subr.bf16.mxu0 0
    %975 = vmatpush1.bf16.msra.mxu0 0
    %976 = vmatprep.subr.bf16.mxu0 0
    %977 = vmatpush1.bf16.msra.mxu0 0
    %978 = vmatprep.subr.bf16.mxu0 0
    %979 = vmatpush1.bf16.msra.mxu0 0
    %980 = vmatprep.subr.bf16.mxu0 0
    %981 = vmatpush1.bf16.msra.mxu0 0
    %982 = vmatprep.subr.bf16.mxu0 0
    %983 = vmatpush1.bf16.msra.mxu0 0
    %984 = vmatprep.subr.bf16.mxu0 0
    %985 = vmatpush1.bf16.msra.mxu0 0
    %986 = vmatprep.subr.bf16.mxu0 0
    %987 = vmatpush1.bf16.msra.mxu0 0
    %988 = vmatprep.subr.bf16.mxu0 0
    %989 = vmatpush1.bf16.msra.mxu0 0
    %990 = vmatprep.mubr.bf16.mxu0 0
    %991 = vmatmul.mubr.bf16.gmra.mrb[0].mxu0 %v944
    %v992 = vpop.f32.mrb[0].mxu0
    %v993 = vadd.f32 %v956, %v992
    %v994 = vpop.f32.mrb[0].mxu0
    %v995 = vpop.f32.mrb[0].mxu0
    %v996 = vadd.f32 %v956, %v995
    %v997 = vpop.f32.mrb[0].mxu0
    %998 = vmatprep.mubr.bf16.mxu0 0
    %999 = vmatmul.mubr.bf16.gmra.mrb[0].mxu0 %v945
    %v1000 = vpop.f32.mrb[0].mxu0
    %v1001 = vadd.f32 %v956, %v1000
    %v1002 = vpop.f32.mrb[0].mxu0
    %v1003 = vpop.f32.mrb[0].mxu0
    %v1004 = vadd.f32 %v956, %v1003
    %v1005 = vpop.f32.mrb[0].mxu0
    %1006 = vmatprep.mubr.bf16.mxu0 0
    %1007 = vmatmul.mubr.bf16.gmra.mrb[0].mxu0 %v946
    %v1008 = vpop.f32.mrb[0].mxu0
    %v1009 = vadd.f32 %v956, %v1008
    %v1010 = vpop.f32.mrb[0].mxu0
    %v1011 = vpop.f32.mrb[0].mxu0
    %v1012 = vadd.f32 %v956, %v1011
    %v1013 = vpop.f32.mrb[0].mxu0
    %1014 = vmatprep.mubr.bf16.mxu0 0
    %1015 = vmatmul.mubr.bf16.gmra.mrb[0].mxu0 %v947
    %v1016 = vpop.f32.mrb[0].mxu0
    %v1017 = vadd.f32 %v956, %v1016
    %v1018 = vpop.f32.mrb[0].mxu0
    %v1019 = vpop.f32.mrb[0].mxu0
    %v1020 = vadd.f32 %v956, %v1019
    %v1021 = vpop.f32.mrb[0].mxu0
    %1022 = vmatprep.mubr.bf16.mxu0 0
    %1023 = vmatmul.mubr.bf16.gmra.mrb[0].mxu0 %v948
    %v1024 = vpop.f32.mrb[0].mxu0
    %v1025 = vadd.f32 %v956, %v1024
    %v1026 = vpop.f32.mrb[0].mxu0
    %v1027 = vpop.f32.mrb[0].mxu0
    %v1028 = vadd.f32 %v956, %v1027
    %v1029 = vpop.f32.mrb[0].mxu0
    %1030 = vmatprep.mubr.bf16.mxu0 0
    %1031 = vmatmul.mubr.bf16.gmra.mrb[0].mxu0 %v949
    %v1032 = vpop.f32.mrb[0].mxu0
    %v1033 = vadd.f32 %v956, %v1032
    %v1034 = vpop.f32.mrb[0].mxu0
    %v1035 = vpop.f32.mrb[0].mxu0
    %v1036 = vadd.f32 %v956, %v1035
    %v1037 = vpop.f32.mrb[0].mxu0
    %1038 = vmatprep.mubr.bf16.mxu0 0
    %1039 = vmatmul.mubr.bf16.gmra.mrb[0].mxu0 %v950
    %v1040 = vpop.f32.mrb[0].mxu0
    %v1041 = vadd.f32 %v956, %v1040
    %v1042 = vpop.f32.mrb[0].mxu0
    %v1043 = vpop.f32.mrb[0].mxu0
    %v1044 = vadd.f32 %v956, %v1043
    %v1045 = vpop.f32.mrb[0].mxu0
    %1046 = vmatprep.mubr.bf16.mxu0 0
    %1047 = vmatmul.mubr.bf16.gmra.mrb[0].mxu0 %v951
    %v1048 = vpop.f32.mrb[0].mxu0
    %v1049 = vadd.f32 %v956, %v1048
    %v1050 = vpop.f32.mrb[0].mxu0
    %v1051 = vpop.f32.mrb[0].mxu0
    %v1052 = vadd.f32 %v956, %v1051
    %v1053 = vpop.f32.mrb[0].mxu0
    %1054 = vdwg.mxu0
    %1055 = vst [vmem:[%s7] sm:$0xff] %v993
    %1056 = vst [vmem:[%s7 + $0x8] sm:$0xff] %v996
    %1057 = vst [vmem:[%s7 + $0x10] sm:$0xff] %v1001
    %1058 = vst [vmem:[%s7 + $0x18] sm:$0xff] %v1004
    %1059 = vst [vmem:[%s7 + $0x20] sm:$0xff] %v1009
    %1060 = vst [vmem:[%s7 + $0x28] sm:$0xff] %v1012
    %1061 = vst [vmem:[%s7 + $0x30] sm:$0xff] %v1017
    %1062 = vst [vmem:[%s7 + $0x38] sm:$0xff] %v1020
    %1063 = vst [vmem:[%s7 + $0x40] sm:$0xff] %v1025
    %1064 = vst [vmem:[%s7 + $0x48] sm:$0xff] %v1028
    %1065 = vst [vmem:[%s7 + $0x50] sm:$0xff] %v1033
    %1066 = vst [vmem:[%s7 + $0x58] sm:$0xff] %v1036
    %1067 = vst [vmem:[%s7 + $0x60] sm:$0xff] %v1041
    %1068 = vst [vmem:[%s7 + $0x68] sm:$0xff] %v1044
    %1069 = vst [vmem:[%s7 + $0x70] sm:$0xff] %v1049
    %1070 = vst [vmem:[%s7 + $0x78] sm:$0xff] %v1052
    // Predicated region
    $region34: #{forward.2} parent=1 // pred_check
      _
    $region35: #{forward.2} parent=1 // pred_check_branch
      %1072 = sbr.rel (0) target = $region37
    $region36: #{forward.2} parent=1 // pred_region
      _
    $region37: #{forward.2} parent=1 // pred_fallthru
      _
    // Predicated region
    $region38: #{forward.2} parent=1 // pred_check
      _
    $region39: #{forward.2} parent=1 // pred_check_branch
      %1074 = sbr.rel (0) target = $region41
    $region40: #{forward.2} parent=1 // pred_region
      _
    $region41: #{forward.2} parent=1 // pred_fallthru
      _
    %1075 = vsyncpa [#allocation8], 1
    %1076 = vsyncpa [#allocation10], 1

</llo_original>
